<compile_context>
chip_gen: v7x
topology: tpu7x:2x2x1
jax: 0.10.0
libtpu: 0.0.40
codegen_flags: <defaults>
</compile_context>

<pallas_src>
import jax
import jax.numpy as jnp
from jax.experimental import pallas as pl
from jax.experimental.pallas import tpu as pltpu


# ----------------------------- Pallas kernels ------------------------------ #

def _mlp_body(x_ref, w1_ref, b1_ref, w2_ref, b2_ref):
    """model_body: Linear -> ReLU -> Linear -> ReLU. Returns f32 [TB, H]."""
    x = x_ref[...].astype(jnp.bfloat16)                       # in-kernel cast (free VPU slack)
    h1 = jnp.dot(x, w1_ref[...],
                 preferred_element_type=jnp.float32) + b1_ref[...]
    h1 = jnp.maximum(h1, 0.0).astype(jnp.bfloat16)            # bf16 back into MXU
    h2 = jnp.dot(h1, w2_ref[...],
                 preferred_element_type=jnp.float32) + b2_ref[...]
    return jnp.maximum(h2, 0.0)                               # f32 [TB, H]


def _embedding_kernel(x_ref, w1_ref, b1_ref, w2_ref, b2_ref, emb_ref):
    """return_embedding=True path: body only."""
    emb_ref[...] = _mlp_body(x_ref, w1_ref, b1_ref, w2_ref, b2_ref
                             ).astype(emb_ref.dtype)


def _fingerprint_kernel(x_ref, mass_ref,
                        w1_ref, b1_ref, w2_ref, b2_ref,
                        wh_ref, bh_ref, wm_ref,
                        out_ref):
    """Full forward: body + head.

    bh_ref already contains bh + mass_shift * wm (folded on host), so the
    kernel only adds the data-dependent rank-1 term mass * wm.
    """
    emb = _mlp_body(x_ref, w1_ref, b1_ref, w2_ref, b2_ref)    # f32 [TB, H]
    logits = jnp.dot(emb.astype(jnp.bfloat16), wh_ref[...],
                     preferred_element_type=jnp.float32) + bh_ref[...]
    logits = logits + mass_ref[...] * wm_ref[...]             # [TB,1] * [1,F]
    out_ref[...] = jax.nn.sigmoid(logits).astype(out_ref.dtype)


# ------------------------------ JAX wrapper -------------------------------- #

_TB_DEFAULT = 512   # amortizes per-step overhead, fills 256-wide MXU on v6e/v7x


def _choose_tb(b, target=_TB_DEFAULT):
    """Pick a batch tile: multiple of 8, <= target, prefers >=2 tiles (v7x has
    two TensorCores) and zero padding whenever b divides cleanly."""
    if b <= 8:
        return b, b                                   # single tile == full dim
    cap = min(target, b)
    if b >= 16:
        cap = min(cap, max(8, (b // 2) // 8 * 8))     # aim for >= 2 tiles
    for tb in range(cap, 7, -1):
        if tb % 8 == 0 and b % tb == 0:
            return tb, b                              # clean split, no padding
    # no clean divisor: pad only the ragged tail tile
    tb = min(target, pl.cdiv(pl.cdiv(b, 2), 8) * 8)
    return tb, pl.cdiv(b, tb) * tb


def combine_molecular_fingerprint(params, batch, mass_shift,
                                  return_embedding=False, tb=_TB_DEFAULT):
    x = batch["input_tensor"]                          # [B, D_in] f32 (no pre-cast)
    B, D = x.shape
    H = params["w1"].shape[1]

    tb, b_pad = _choose_tb(B, tb)
    grid = (b_pad // tb,)
    if b_pad != B:                                     # only pad the ragged tail
        x = jnp.pad(x, ((0, b_pad - B), (0, 0)))

    batch_spec = lambda shape: pl.BlockSpec(shape, lambda i: (i, 0))
    const_spec = lambda shape: pl.BlockSpec(shape, lambda i: (0, 0))
    cparams = pltpu.CompilerParams(dimension_semantics=("parallel",))

    if return_embedding:
        emb = pl.pallas_call(
            _embedding_kernel,
            grid=grid,
            out_shape=jax.ShapeDtypeStruct((b_pad, H), jnp.bfloat16),
            in_specs=[
                batch_spec((tb, D)),                       # x tile (f32)
                const_spec((D, H)), const_spec((1, H)),    # w1 (bf16), b1 (f32)
                const_spec((H, H)), const_spec((1, H)),    # w2 (bf16), b2 (f32)
            ],
            out_specs=batch_spec((tb, H)),
            compiler_params=cparams,
        )(x, params["w1"], params["b1"], params["w2"], params["b2"])
        return emb if b_pad == B else emb[:B]

    F = params["wh"].shape[1]
    mass = batch["precursor_mass"].reshape(B, 1).astype(jnp.float32)
    if b_pad != B:
        mass = jnp.pad(mass, ((0, b_pad - B), (0, 0)))

    # Fold the constant shift term into the head bias:
    # emb@wh + bh + (mass + shift)*wm  ==  emb@wh + (bh + shift*wm) + mass*wm
    bh_eff = params["bh"] + jnp.float32(mass_shift) * params["wm"]

    out = pl.pallas_call(
        _fingerprint_kernel,
        grid=grid,
        out_shape=jax.ShapeDtypeStruct((b_pad, F), jnp.bfloat16),
        in_specs=[
            batch_spec((tb, D)),                           # x tile (f32)
            batch_spec((tb, 1)),                           # precursor mass tile
            const_spec((D, H)), const_spec((1, H)),        # w1, b1
            const_spec((H, H)), const_spec((1, H)),        # w2, b2
            const_spec((H, F)), const_spec((1, F)),        # wh, bh_eff
            const_spec((1, F)),                            # wm (mass weight)
        ],
        out_specs=batch_spec((tb, F)),
        compiler_params=cparams,
    )(x, mass,
      params["w1"], params["b1"], params["w2"], params["b2"],
      params["wh"], bh_eff, params["wm"])
    return out if b_pad == B else out[:B]


# --------------------------- deterministic init ----------------------------- #

def init_params(key, d_in, hidden, n_fp):
    """Kernel-ready params: matmul weights pre-cast to bf16 once; biases f32."""
    ks = jax.random.split(key, 5)
    scale = lambda fan_in: 1.0 / jnp.sqrt(jnp.float32(fan_in))
    return {
        "w1": (jax.random.normal(ks[0], (d_in, hidden), jnp.float32)
               * scale(d_in)).astype(jnp.bfloat16),
        "b1": jnp.zeros((1, hidden), jnp.float32),
        "w2": (jax.random.normal(ks[1], (hidden, hidden), jnp.float32)
               * scale(hidden)).astype(jnp.bfloat16),
        "b2": jnp.zeros((1, hidden), jnp.float32),
        "wh": (jax.random.normal(ks[2], (hidden, n_fp), jnp.float32)
               * scale(hidden)).astype(jnp.bfloat16),
        "bh": jnp.zeros((1, n_fp), jnp.float32),
        "wm": jax.random.normal(ks[3], (1, n_fp), jnp.float32) * 0.01,
    }


# ------------------------------ pure-JAX ref -------------------------------- #

def _reference(params, batch, mass_shift, return_embedding=False):
    x = batch["input_tensor"].astype(jnp.float32)
    w1 = params["w1"].astype(jnp.float32)
    w2 = params["w2"].astype(jnp.float32)
    h1 = jnp.maximum(x @ w1 + params["b1"], 0.0)
    emb = jnp.maximum(h1 @ w2 + params["b2"], 0.0)
    if return_embedding:
        return emb
    wh = params["wh"].astype(jnp.float32)
    mass = batch["precursor_mass"].reshape(-1, 1).astype(jnp.float32)
    logits = emb @ wh + params["bh"] + (mass + mass_shift) * params["wm"]
    return jax.nn.sigmoid(logits)


# ---------------------------------- main ------------------------------------ #

if __name__ == "__main__":
    B, D_IN, HIDDEN, N_FP = 8, 256, 128, 128
    MASS_SHIFT = 1.00728   # proton mass shift passed to the head

    key = jax.random.PRNGKey(0)
    k_x, k_m, k_p = jax.random.split(key, 3)

    batch = {
        "input_tensor": jax.random.normal(k_x, (B, D_IN), jnp.float32),
        "precursor_mass": jax.random.uniform(k_m, (B, 1), jnp.float32,
                                             minval=100.0, maxval=500.0),
    }
    params = init_params(k_p, D_IN, HIDDEN, N_FP)

    # Full forward: out = model_head(model_body(x), batch, mass_shift)
    out = combine_molecular_fingerprint(params, batch, MASS_SHIFT,
                                        return_embedding=False)
    # return_embedding=True path: embeddings = model_body(x)
    emb = combine_molecular_fingerprint(params, batch, MASS_SHIFT,
                                        return_embedding=True)

    jax.block_until_ready(out)
    jax.block_until_ready(emb)

    assert out.shape == (B, N_FP) and emb.shape == (B, HIDDEN)
    assert bool(jnp.all(jnp.isfinite(out))) and bool(jnp.all(jnp.isfinite(emb)))
    assert bool(jnp.all((out >= 0.0) & (out <= 1.0)))   # sigmoid range

    # Loose check against a pure-JAX f32 reference (bf16 MXU/store tolerance).
    ref_out = _reference(params, batch, MASS_SHIFT, return_embedding=False)
    ref_emb = _reference(params, batch, MASS_SHIFT, return_embedding=True)
    assert bool(jnp.allclose(out.astype(jnp.float32), ref_out, atol=5e-2))
    assert bool(jnp.allclose(emb.astype(jnp.float32), ref_emb,
                             atol=1.5e-1, rtol=5e-2))
    print("KERNEL_OK")
</pallas_src>

<mosaic_0001>
module attributes {stable_mosaic.version = 11 : i64} {
  func.func @_fingerprint_kernel(%arg0: i32, %arg1: memref<8x256xf32, #tpu.memory_space<vmem>>, %arg2: memref<8x1xf32, #tpu.memory_space<vmem>>, %arg3: memref<256x128xbf16, #tpu.memory_space<vmem>>, %arg4: memref<1x128xf32, #tpu.memory_space<vmem>>, %arg5: memref<128x128xbf16, #tpu.memory_space<vmem>>, %arg6: memref<1x128xf32, #tpu.memory_space<vmem>>, %arg7: memref<128x128xbf16, #tpu.memory_space<vmem>>, %arg8: memref<1x128xf32, #tpu.memory_space<vmem>>, %arg9: memref<1x128xf32, #tpu.memory_space<vmem>>, %arg10: memref<8x128xbf16, #tpu.memory_space<vmem>>) attributes {dimension_semantics = [#tpu.dimension_semantics<parallel>], iteration_bounds = array<i64: 1>, scalar_prefetch = 0 : i64, scratch_operands = 0 : i64, tpu.core_type = #tpu.core_type<tc>, window_params = [{transform_indices = @transform_0, window_bounds = array<i64: 8, 256>}, {transform_indices = @transform_1, window_bounds = array<i64: 8, 1>}, {pipeline_mode = #tpu.pipeline_mode<synchronous>, transform_indices = @transform_2, window_bounds = array<i64: 256, 128>}, {pipeline_mode = #tpu.pipeline_mode<synchronous>, transform_indices = @transform_3, window_bounds = array<i64: 1, 128>}, {pipeline_mode = #tpu.pipeline_mode<synchronous>, transform_indices = @transform_4, window_bounds = array<i64: 128, 128>}, {pipeline_mode = #tpu.pipeline_mode<synchronous>, transform_indices = @transform_5, window_bounds = array<i64: 1, 128>}, {pipeline_mode = #tpu.pipeline_mode<synchronous>, transform_indices = @transform_6, window_bounds = array<i64: 128, 128>}, {pipeline_mode = #tpu.pipeline_mode<synchronous>, transform_indices = @transform_7, window_bounds = array<i64: 1, 128>}, {pipeline_mode = #tpu.pipeline_mode<synchronous>, transform_indices = @transform_8, window_bounds = array<i64: 1, 128>}, {transform_indices = @transform_9, window_bounds = array<i64: 8, 128>}]} {
    %c0 = arith.constant 0 : index
    %c0_0 = arith.constant 0 : index
    %0 = vector.load %arg1[%c0, %c0_0] : memref<8x256xf32, #tpu.memory_space<vmem>>, vector<8x256xf32>
    %1 = arith.truncf %0 : vector<8x256xf32> to vector<8x256xbf16>
    %c0_1 = arith.constant 0 : index
    %c0_2 = arith.constant 0 : index
    %2 = vector.load %arg3[%c0_1, %c0_2] : memref<256x128xbf16, #tpu.memory_space<vmem>>, vector<256x128xbf16>
    %cst = arith.constant dense<0.000000e+00> : vector<8x128xf32>
    %3 = tpu.matmul %1, %2, %cst {dimension_numbers = #tpu.dot_dimension_numbers<[1], [0], [0], [1], [0, 0, 1, 1], [], []>} : vector<8x256xbf16>, vector<256x128xbf16>, vector<8x128xf32> -> vector<8x128xf32>
    %c0_3 = arith.constant 0 : index
    %c0_4 = arith.constant 0 : index
    %4 = vector.load %arg4[%c0_3, %c0_4] : memref<1x128xf32, #tpu.memory_space<vmem>>, vector<1x128xf32>
    %5 = vector.broadcast %4 : vector<1x128xf32> to vector<8x128xf32>
    %6 = arith.addf %3, %5 : vector<8x128xf32>
    %cst_5 = arith.constant 0.000000e+00 : f32
    %7 = vector.broadcast %cst_5 : f32 to vector<8x128xf32>
    %8 = arith.maximumf %6, %7 : vector<8x128xf32>
    %9 = arith.truncf %8 : vector<8x128xf32> to vector<8x128xbf16>
    %c0_6 = arith.constant 0 : index
    %c0_7 = arith.constant 0 : index
    %10 = vector.load %arg5[%c0_6, %c0_7] : memref<128x128xbf16, #tpu.memory_space<vmem>>, vector<128x128xbf16>
    %cst_8 = arith.constant dense<0.000000e+00> : vector<8x128xf32>
    %11 = tpu.matmul %9, %10, %cst_8 {dimension_numbers = #tpu.dot_dimension_numbers<[1], [0], [0], [1], [0, 0, 1, 1], [], []>} : vector<8x128xbf16>, vector<128x128xbf16>, vector<8x128xf32> -> vector<8x128xf32>
    %c0_9 = arith.constant 0 : index
    %c0_10 = arith.constant 0 : index
    %12 = vector.load %arg6[%c0_9, %c0_10] : memref<1x128xf32, #tpu.memory_space<vmem>>, vector<1x128xf32>
    %13 = vector.broadcast %12 : vector<1x128xf32> to vector<8x128xf32>
    %14 = arith.addf %11, %13 : vector<8x128xf32>
    %cst_11 = arith.constant 0.000000e+00 : f32
    %15 = vector.broadcast %cst_11 : f32 to vector<8x128xf32>
    %16 = arith.maximumf %14, %15 : vector<8x128xf32>
    %17 = arith.truncf %16 : vector<8x128xf32> to vector<8x128xbf16>
    %c0_12 = arith.constant 0 : index
    %c0_13 = arith.constant 0 : index
    %18 = vector.load %arg7[%c0_12, %c0_13] : memref<128x128xbf16, #tpu.memory_space<vmem>>, vector<128x128xbf16>
    %cst_14 = arith.constant dense<0.000000e+00> : vector<8x128xf32>
    %19 = tpu.matmul %17, %18, %cst_14 {dimension_numbers = #tpu.dot_dimension_numbers<[1], [0], [0], [1], [0, 0, 1, 1], [], []>} : vector<8x128xbf16>, vector<128x128xbf16>, vector<8x128xf32> -> vector<8x128xf32>
    %c0_15 = arith.constant 0 : index
    %c0_16 = arith.constant 0 : index
    %20 = vector.load %arg8[%c0_15, %c0_16] : memref<1x128xf32, #tpu.memory_space<vmem>>, vector<1x128xf32>
    %21 = vector.broadcast %20 : vector<1x128xf32> to vector<8x128xf32>
    %22 = arith.addf %19, %21 : vector<8x128xf32>
    %c0_17 = arith.constant 0 : index
    %c0_18 = arith.constant 0 : index
    %23 = vector.load %arg2[%c0_17, %c0_18] : memref<8x1xf32, #tpu.memory_space<vmem>>, vector<8x1xf32>
    %c0_19 = arith.constant 0 : index
    %c0_20 = arith.constant 0 : index
    %24 = vector.load %arg9[%c0_19, %c0_20] : memref<1x128xf32, #tpu.memory_space<vmem>>, vector<1x128xf32>
    %25 = vector.broadcast %23 : vector<8x1xf32> to vector<8x128xf32>
    %26 = vector.broadcast %24 : vector<1x128xf32> to vector<8x128xf32>
    %27 = arith.mulf %25, %26 : vector<8x128xf32>
    %28 = arith.addf %22, %27 : vector<8x128xf32>
    %29 = arith.negf %28 : vector<8x128xf32>
    %30 = math.exp %29 : vector<8x128xf32>
    %cst_21 = arith.constant 1.000000e+00 : f32
    %31 = vector.broadcast %cst_21 : f32 to vector<8x128xf32>
    %32 = arith.addf %31, %30 : vector<8x128xf32>
    %33 = arith.divf %31, %32 : vector<8x128xf32>
    %34 = arith.truncf %33 : vector<8x128xf32> to vector<8x128xbf16>
    %c0_22 = arith.constant 0 : index
    %c0_23 = arith.constant 0 : index
    %35 = vector.load %arg10[%c0_22, %c0_23] : memref<8x128xbf16, #tpu.memory_space<vmem>>, vector<8x128xbf16>
    tpu.vector_store %arg10[%c0_22, %c0_23], %34 {strides = array<i32>} : memref<8x128xbf16, #tpu.memory_space<vmem>>, vector<8x128xbf16>,
    return
  }
  func.func @transform_0(%arg0: i32) -> (i32, i32) {
    %c0_i32 = arith.constant 0 : i32
    %c0_i32_0 = arith.constant 0 : i32
    return %arg0, %c0_i32 : i32, i32
  }
  func.func @transform_1(%arg0: i32) -> (i32, i32) {
    %c0_i32 = arith.constant 0 : i32
    %c0_i32_0 = arith.constant 0 : i32
    return %arg0, %c0_i32 : i32, i32
  }
  func.func @transform_2(%arg0: i32) -> (i32, i32) {
    %c0_i32 = arith.constant 0 : i32
    %c0_i32_0 = arith.constant 0 : i32
    %c0_i32_1 = arith.constant 0 : i32
    return %c0_i32, %c0_i32_0 : i32, i32
  }
  func.func @transform_3(%arg0: i32) -> (i32, i32) {
    %c0_i32 = arith.constant 0 : i32
    %c0_i32_0 = arith.constant 0 : i32
    %c0_i32_1 = arith.constant 0 : i32
    return %c0_i32, %c0_i32_0 : i32, i32
  }
  func.func @transform_4(%arg0: i32) -> (i32, i32) {
    %c0_i32 = arith.constant 0 : i32
    %c0_i32_0 = arith.constant 0 : i32
    %c0_i32_1 = arith.constant 0 : i32
    return %c0_i32, %c0_i32_0 : i32, i32
  }
  func.func @transform_5(%arg0: i32) -> (i32, i32) {
    %c0_i32 = arith.constant 0 : i32
    %c0_i32_0 = arith.constant 0 : i32
    %c0_i32_1 = arith.constant 0 : i32
    return %c0_i32, %c0_i32_0 : i32, i32
  }
  func.func @transform_6(%arg0: i32) -> (i32, i32) {
    %c0_i32 = arith.constant 0 : i32
    %c0_i32_0 = arith.constant 0 : i32
    %c0_i32_1 = arith.constant 0 : i32
    return %c0_i32, %c0_i32_0 : i32, i32
  }
  func.func @transform_7(%arg0: i32) -> (i32, i32) {
    %c0_i32 = arith.constant 0 : i32
    %c0_i32_0 = arith.constant 0 : i32
    %c0_i32_1 = arith.constant 0 : i32
    return %c0_i32, %c0_i32_0 : i32, i32
  }
  func.func @transform_8(%arg0: i32) -> (i32, i32) {
    %c0_i32 = arith.constant 0 : i32
    %c0_i32_0 = arith.constant 0 : i32
    %c0_i32_1 = arith.constant 0 : i32
    return %c0_i32, %c0_i32_0 : i32, i32
  }
  func.func @transform_9(%arg0: i32) -> (i32, i32) {
    %c0_i32 = arith.constant 0 : i32
    %c0_i32_0 = arith.constant 0 : i32
    return %arg0, %c0_i32 : i32, i32
  }
}

</mosaic_0001>

<llo_original>
// kernel: tpu_custom_call.1
$region0: #{tpu_custom_call.1}
  #allocation0 [shape = 'u32[]', space=smem, size = 0x4, offset = 0x4, fixed_abs, tag = 'smem constant byte address 0x4 - core index']
  #allocation1 [shape = 'u32[144,128]{1,0:T(1,128)}', space=vmem, size = 0x12000, scoped, tag = 'internal scratch']
  %s0 = inlined_call_operand.hbm [shape: f32[8,256], index: 0, kind: input, shape index: {}]
  %s1 = inlined_call_operand.vmem [shape: f32[8,1], index: 1, kind: input, shape index: {}]
  %s2 = inlined_call_operand.hbm [shape: bf16[256,128], index: 2, kind: input, shape index: {}]
  %s3 = inlined_call_operand.vmem [shape: f32[1,128], index: 3, kind: input, shape index: {}]
  %s4 = inlined_call_operand.hbm [shape: bf16[128,128], index: 4, kind: input, shape index: {}]
  %s5 = inlined_call_operand.vmem [shape: f32[1,128], index: 5, kind: input, shape index: {}]
  %s6 = inlined_call_operand.hbm [shape: bf16[128,128], index: 6, kind: input, shape index: {}]
  %s7 = inlined_call_operand.vmem [shape: f32[1,128], index: 7, kind: input, shape index: {}]
  %s8 = inlined_call_operand.vmem [shape: f32[1,128], index: 8, kind: input, shape index: {}]
  %s9 = inlined_call_operand.hbm [shape: bf16[8,128], index: 9, kind: output, shape index: {}]
  %s10 = sld [smem:[#allocation0]]
  $region62: #{tpu_custom_call.1} parent=0
    _
  %s12 = ssub.s32 1, %s10
  %s13 = scalar_select 0, %s12, %s10
  $region1: #{tpu_custom_call.1} parent=0
    #allocation2 [shape = 'u8[8192]{0}', space=vmem, size = 0x2000, scoped, tag = 'input window, operand 0, single buffered']
    #allocation3 [shape = 's32[1]{0}', space=sflag, size = 0x4, scoped, tag = 'scoped memory for tpu_custom_call.1']
    #allocation4 [shape = 's32[1]{0}', space=sflag, size = 0x4, scoped, tag = 'scoped memory for tpu_custom_call.1']
    #allocation5 [shape = 'u8[65536]{0}', space=vmem, size = 0x10000, scoped, tag = 'input window, operand 2, single buffered']
    #allocation6 [shape = 's32[1]{0}', space=sflag, size = 0x4, scoped, tag = 'scoped memory for tpu_custom_call.1']
    #allocation7 [shape = 'u8[32768]{0}', space=vmem, size = 0x8000, scoped, tag = 'input window, operand 4, single buffered']
    #allocation8 [shape = 'u8[32768]{0}', space=vmem, size = 0x8000, scoped, tag = 'input window, operand 6, single buffered']
    #allocation9 [shape = 's32[1]{0}', space=sflag, size = 0x4, scoped, tag = 'scoped memory for tpu_custom_call.1']
    #allocation10 [shape = 'u8[2048]{0}', space=vmem, size = 0x800, scoped, tag = 'output window, operand 0, single buffered']
    %14 = vsyncpa [#allocation3], 0
    %15 = vsyncpa [#allocation6], 0
    %16 = vsyncpa [#allocation9], 0
    %17 = vsyncpa [#allocation4], 0
    // Predicated region
    $region2: #{tpu_custom_call.1} parent=1 // pred_check
      _
    $region3: #{tpu_custom_call.1} parent=1 // pred_check_branch
      %19 = sbr.rel (0) target = $region5
    $region4: #{tpu_custom_call.1} parent=1 // pred_region
      %s21 = ssub.s32 256, 256
      %22 = vsyncadd [#allocation3], %s21
      %s24 = sshll.u32 [#allocation2], 4
      %s25 = int_to_ptr.vmem [resolvable:$true] %s24
      %27 = dma.hbm_to_vmem [thread:$0]  %s0, 256, %s25, [#allocation3]
    $region5: #{tpu_custom_call.1} parent=1 // pred_fallthru
      _
    // Predicated region
    $region6: #{tpu_custom_call.1} parent=1 // pred_check
      _
    $region7: #{tpu_custom_call.1} parent=1 // pred_check_branch
      %29 = sbr.rel (0) target = $region9
    $region8: #{tpu_custom_call.1} parent=1 // pred_region
      _
    $region9: #{tpu_custom_call.1} parent=1 // pred_fallthru
      _
    // Predicated region
    $region10: #{tpu_custom_call.1} parent=1 // pred_check
      _
    $region11: #{tpu_custom_call.1} parent=1 // pred_check_branch
      %31 = sbr.rel (0) target = $region13
    $region12: #{tpu_custom_call.1} parent=1 // pred_region
      %s33 = ssub.s32 2048, 2048
      %34 = vsyncadd [#allocation6], %s33
      %s35 = sshll.u32 [#allocation5], 4
      %s36 = int_to_ptr.vmem [resolvable:$true] %s35
      %41 = dma.hbm_to_vmem [thread:$0]  %s2, 2048, %s36, [#allocation6], 64, 64, 4
    $region13: #{tpu_custom_call.1} parent=1 // pred_fallthru
      _
    // Predicated region
    $region14: #{tpu_custom_call.1} parent=1 // pred_check
      _
    $region15: #{tpu_custom_call.1} parent=1 // pred_check_branch
      %43 = sbr.rel (0) target = $region17
    $region16: #{tpu_custom_call.1} parent=1 // pred_region
      _
    $region17: #{tpu_custom_call.1} parent=1 // pred_fallthru
      _
    // Predicated region
    $region18: #{tpu_custom_call.1} parent=1 // pred_check
      _
    $region19: #{tpu_custom_call.1} parent=1 // pred_check_branch
      %45 = sbr.rel (0) target = $region21
    $region20: #{tpu_custom_call.1} parent=1 // pred_region
      %s47 = ssub.s32 1024, 1024
      %48 = vsyncadd [#allocation6], %s47
      %s49 = sshll.u32 [#allocation7], 4
      %s50 = int_to_ptr.vmem [resolvable:$true] %s49
      %55 = dma.hbm_to_vmem [thread:$0]  %s4, 1024, %s50, [#allocation6], 64, 64, 4
    $region21: #{tpu_custom_call.1} parent=1 // pred_fallthru
      _
    // Predicated region
    $region22: #{tpu_custom_call.1} parent=1 // pred_check
      _
    $region23: #{tpu_custom_call.1} parent=1 // pred_check_branch
      %57 = sbr.rel (0) target = $region25
    $region24: #{tpu_custom_call.1} parent=1 // pred_region
      _
    $region25: #{tpu_custom_call.1} parent=1 // pred_fallthru
      _
    // Predicated region
    $region26: #{tpu_custom_call.1} parent=1 // pred_check
      _
    $region27: #{tpu_custom_call.1} parent=1 // pred_check_branch
      %59 = sbr.rel (0) target = $region29
    $region28: #{tpu_custom_call.1} parent=1 // pred_region
      %s61 = ssub.s32 1024, 1024
      %62 = vsyncadd [#allocation9], %s61
      %s63 = sshll.u32 [#allocation8], 4
      %s64 = int_to_ptr.vmem [resolvable:$true] %s63
      %69 = dma.hbm_to_vmem [thread:$0]  %s6, 1024, %s64, [#allocation9], 64, 64, 4
    $region29: #{tpu_custom_call.1} parent=1 // pred_fallthru
      _
    // Predicated region
    $region30: #{tpu_custom_call.1} parent=1 // pred_check
      _
    $region31: #{tpu_custom_call.1} parent=1 // pred_check_branch
      %71 = sbr.rel (0) target = $region33
    $region32: #{tpu_custom_call.1} parent=1 // pred_region
      _
    $region33: #{tpu_custom_call.1} parent=1 // pred_fallthru
      _
    // Predicated region
    $region34: #{tpu_custom_call.1} parent=1 // pred_check
      _
    $region35: #{tpu_custom_call.1} parent=1 // pred_check_branch
      %73 = sbr.rel (0) target = $region37
    $region36: #{tpu_custom_call.1} parent=1 // pred_region
      _
    $region37: #{tpu_custom_call.1} parent=1 // pred_fallthru
      _
    // Predicated region
    $region38: #{tpu_custom_call.1} parent=1 // pred_check
      _
    $region39: #{tpu_custom_call.1} parent=1 // pred_check_branch
      %75 = sbr.rel (0) target = $region41
    $region40: #{tpu_custom_call.1} parent=1 // pred_region
      %76 = dma.done [#allocation3], 256
    $region41: #{tpu_custom_call.1} parent=1 // pred_fallthru
      _
    // Predicated region
    $region42: #{tpu_custom_call.1} parent=1 // pred_check
      _
    $region43: #{tpu_custom_call.1} parent=1 // pred_check_branch
      %78 = sbr.rel (0) target = $region45
    $region44: #{tpu_custom_call.1} parent=1 // pred_region
      %79 = dma.done [#allocation6], 2048
    $region45: #{tpu_custom_call.1} parent=1 // pred_fallthru
      _
    // Predicated region
    $region46: #{tpu_custom_call.1} parent=1 // pred_check
      _
    $region47: #{tpu_custom_call.1} parent=1 // pred_check_branch
      %81 = sbr.rel (0) target = $region49
    $region48: #{tpu_custom_call.1} parent=1 // pred_region
      %82 = dma.done [#allocation6], 1024
    $region49: #{tpu_custom_call.1} parent=1 // pred_fallthru
      _
    // Predicated region
    $region50: #{tpu_custom_call.1} parent=1 // pred_check
      _
    $region51: #{tpu_custom_call.1} parent=1 // pred_check_branch
      %84 = sbr.rel (0) target = $region53
    $region52: #{tpu_custom_call.1} parent=1 // pred_region
      %85 = dma.done [#allocation9], 1024
    $region53: #{tpu_custom_call.1} parent=1 // pred_fallthru
      _
    %v87 = vld [vmem:[#allocation2] sm:$0xff]
    %v88 = vld [vmem:[#allocation2 + $0x8] sm:$0xff]
    %v89 = vpack.c.bf16 %v87, %v87
    %v90 = vpack.c.bf16 %v88, %v88
    %v91 = vld [vmem:[#allocation5] sm:$0xf]
    %v92 = vld [vmem:[#allocation5 + $0x4] sm:$0xf]
    %v93 = vld [vmem:[#allocation5 + $0x8] sm:$0xf]
    %v94 = vld [vmem:[#allocation5 + $0xc] sm:$0xf]
    %v95 = vld [vmem:[#allocation5 + $0x10] sm:$0xf]
    %v96 = vld [vmem:[#allocation5 + $0x14] sm:$0xf]
    %v97 = vld [vmem:[#allocation5 + $0x18] sm:$0xf]
    %v98 = vld [vmem:[#allocation5 + $0x1c] sm:$0xf]
    %v99 = vld [vmem:[#allocation5 + $0x20] sm:$0xf]
    %v100 = vld [vmem:[#allocation5 + $0x24] sm:$0xf]
    %v101 = vld [vmem:[#allocation5 + $0x28] sm:$0xf]
    %v102 = vld [vmem:[#allocation5 + $0x2c] sm:$0xf]
    %v103 = vld [vmem:[#allocation5 + $0x30] sm:$0xf]
    %v104 = vld [vmem:[#allocation5 + $0x34] sm:$0xf]
    %v105 = vld [vmem:[#allocation5 + $0x38] sm:$0xf]
    %v106 = vld [vmem:[#allocation5 + $0x3c] sm:$0xf]
    %v107 = vld [vmem:[#allocation5 + $0x40] sm:$0xf]
    %v108 = vld [vmem:[#allocation5 + $0x44] sm:$0xf]
    %v109 = vld [vmem:[#allocation5 + $0x48] sm:$0xf]
    %v110 = vld [vmem:[#allocation5 + $0x4c] sm:$0xf]
    %v111 = vld [vmem:[#allocation5 + $0x50] sm:$0xf]
    %v112 = vld [vmem:[#allocation5 + $0x54] sm:$0xf]
    %v113 = vld [vmem:[#allocation5 + $0x58] sm:$0xf]
    %v114 = vld [vmem:[#allocation5 + $0x5c] sm:$0xf]
    %v115 = vld [vmem:[#allocation5 + $0x60] sm:$0xf]
    %v116 = vld [vmem:[#allocation5 + $0x64] sm:$0xf]
    %v117 = vld [vmem:[#allocation5 + $0x68] sm:$0xf]
    %v118 = vld [vmem:[#allocation5 + $0x6c] sm:$0xf]
    %v119 = vld [vmem:[#allocation5 + $0x70] sm:$0xf]
    %v120 = vld [vmem:[#allocation5 + $0x74] sm:$0xf]
    %v121 = vld [vmem:[#allocation5 + $0x78] sm:$0xf]
    %v122 = vld [vmem:[#allocation5 + $0x7c] sm:$0xf]
    %v123 = vld [vmem:[%s3] sm:$0x1]
    %v125 = vlaneseq
    %v126 = vshrl.u32 %v125, 7
    %v127 = vsub.s32 0, %v126
    %v128 = vrot.slane %v123, %v127
    %v162 = vunpack.c.l.b16 %v91
    %v163 = vunpack.c.l.b16 %v92
    %v164 = vunpack.c.l.b16 %v93
    %v165 = vunpack.c.l.b16 %v94
    %v166 = vunpack.c.l.b16 %v95
    %v167 = vunpack.c.l.b16 %v96
    %v168 = vunpack.c.l.b16 %v97
    %v169 = vunpack.c.l.b16 %v98
    %v170 = vunpack.c.l.b16 %v99
    %v171 = vunpack.c.l.b16 %v100
    %v172 = vunpack.c.l.b16 %v101
    %v173 = vunpack.c.l.b16 %v102
    %v174 = vunpack.c.l.b16 %v103
    %v175 = vunpack.c.l.b16 %v104
    %v176 = vunpack.c.l.b16 %v105
    %v177 = vunpack.c.l.b16 %v106
    %v178 = vunpack.c.l.b16 %v107
    %v179 = vunpack.c.l.b16 %v108
    %v180 = vunpack.c.l.b16 %v109
    %v181 = vunpack.c.l.b16 %v110
    %v182 = vunpack.c.l.b16 %v111
    %v183 = vunpack.c.l.b16 %v112
    %v184 = vunpack.c.l.b16 %v113
    %v185 = vunpack.c.l.b16 %v114
    %v186 = vunpack.c.l.b16 %v115
    %v187 = vunpack.c.l.b16 %v116
    %v188 = vunpack.c.l.b16 %v117
    %v189 = vunpack.c.l.b16 %v118
    %v190 = vunpack.c.l.b16 %v119
    %v191 = vunpack.c.l.b16 %v120
    %v192 = vunpack.c.l.b16 %v121
    %v193 = vunpack.c.l.b16 %v122
    %v194 = vpack.c.b16 %v163, %v162
    %v195 = vpack.c.b16 %v165, %v164
    %v196 = vpack.c.b16 %v167, %v166
    %v197 = vpack.c.b16 %v169, %v168
    %v198 = vpack.c.b16 %v171, %v170
    %v199 = vpack.c.b16 %v173, %v172
    %v200 = vpack.c.b16 %v175, %v174
    %v201 = vpack.c.b16 %v177, %v176
    %v202 = vpack.c.b16 %v179, %v178
    %v203 = vpack.c.b16 %v181, %v180
    %v204 = vpack.c.b16 %v183, %v182
    %v205 = vpack.c.b16 %v185, %v184
    %v206 = vpack.c.b16 %v187, %v186
    %v207 = vpack.c.b16 %v189, %v188
    %v208 = vpack.c.b16 %v191, %v190
    %v209 = vpack.c.b16 %v193, %v192
    %226 = vmatprep.subr.bf16.mxu0 0
    %227 = vmatpush1.bf16.msra.mxu0 %v194
    %228 = vmatprep.subr.bf16.mxu0 0
    %229 = vmatpush1.bf16.msra.mxu0 %v195
    %230 = vmatprep.subr.bf16.mxu0 0
    %231 = vmatpush1.bf16.msra.mxu0 %v196
    %232 = vmatprep.subr.bf16.mxu0 0
    %233 = vmatpush1.bf16.msra.mxu0 %v197
    %234 = vmatprep.subr.bf16.mxu0 0
    %235 = vmatpush1.bf16.msra.mxu0 %v198
    %236 = vmatprep.subr.bf16.mxu0 0
    %237 = vmatpush1.bf16.msra.mxu0 %v199
    %238 = vmatprep.subr.bf16.mxu0 0
    %239 = vmatpush1.bf16.msra.mxu0 %v200
    %240 = vmatprep.subr.bf16.mxu0 0
    %241 = vmatpush1.bf16.msra.mxu0 %v201
    %242 = vmatprep.subr.bf16.mxu0 0
    %243 = vmatpush1.bf16.msra.mxu0 %v202
    %244 = vmatprep.subr.bf16.mxu0 0
    %245 = vmatpush1.bf16.msra.mxu0 %v203
    %246 = vmatprep.subr.bf16.mxu0 0
    %247 = vmatpush1.bf16.msra.mxu0 %v204
    %248 = vmatprep.subr.bf16.mxu0 0
    %249 = vmatpush1.bf16.msra.mxu0 %v205
    %250 = vmatprep.subr.bf16.mxu0 0
    %251 = vmatpush1.bf16.msra.mxu0 %v206
    %252 = vmatprep.subr.bf16.mxu0 0
    %253 = vmatpush1.bf16.msra.mxu0 %v207
    %254 = vmatprep.subr.bf16.mxu0 0
    %255 = vmatpush1.bf16.msra.mxu0 %v208
    %256 = vmatprep.subr.bf16.mxu0 0
    %257 = vmatpush1.bf16.msra.mxu0 %v209
    %258 = vmatprep.mubr.bf16.mxu0 %v90
    %259 = vmatmul.mubr.bf16.gmra.mrb[0].mxu0 %v89
    %v260 = vpop.f32.mrb[0].mxu0
    %v261 = vadd.f32 %v128, %v260
    %v262 = vpop.f32.mrb[0].mxu0
    %v263 = vpop.f32.mrb[0].mxu0
    %v264 = vpop.f32.mrb[0].mxu0
    %265 = vdwg.mxu0
    %v266 = vmax.f32 %v261, 0.0
    %v267 = vpack.c.bf16 %v266, %v266
    %v268 = vld [vmem:[#allocation7] sm:$0xf]
    %v269 = vld [vmem:[#allocation7 + $0x4] sm:$0xf]
    %v270 = vld [vmem:[#allocation7 + $0x8] sm:$0xf]
    %v271 = vld [vmem:[#allocation7 + $0xc] sm:$0xf]
    %v272 = vld [vmem:[#allocation7 + $0x10] sm:$0xf]
    %v273 = vld [vmem:[#allocation7 + $0x14] sm:$0xf]
    %v274 = vld [vmem:[#allocation7 + $0x18] sm:$0xf]
    %v275 = vld [vmem:[#allocation7 + $0x1c] sm:$0xf]
    %v276 = vld [vmem:[#allocation7 + $0x20] sm:$0xf]
    %v277 = vld [vmem:[#allocation7 + $0x24] sm:$0xf]
    %v278 = vld [vmem:[#allocation7 + $0x28] sm:$0xf]
    %v279 = vld [vmem:[#allocation7 + $0x2c] sm:$0xf]
    %v280 = vld [vmem:[#allocation7 + $0x30] sm:$0xf]
    %v281 = vld [vmem:[#allocation7 + $0x34] sm:$0xf]
    %v282 = vld [vmem:[#allocation7 + $0x38] sm:$0xf]
    %v283 = vld [vmem:[#allocation7 + $0x3c] sm:$0xf]
    %v284 = vld [vmem:[%s5] sm:$0x1]
    %v286 = vlaneseq
    %v287 = vshrl.u32 %v286, 7
    %v288 = vsub.s32 0, %v287
    %v289 = vrot.slane %v284, %v288
    %v307 = vunpack.c.l.b16 %v268
    %v308 = vunpack.c.l.b16 %v269
    %v309 = vunpack.c.l.b16 %v270
    %v310 = vunpack.c.l.b16 %v271
    %v311 = vunpack.c.l.b16 %v272
    %v312 = vunpack.c.l.b16 %v273
    %v313 = vunpack.c.l.b16 %v274
    %v314 = vunpack.c.l.b16 %v275
    %v315 = vunpack.c.l.b16 %v276
    %v316 = vunpack.c.l.b16 %v277
    %v317 = vunpack.c.l.b16 %v278
    %v318 = vunpack.c.l.b16 %v279
    %v319 = vunpack.c.l.b16 %v280
    %v320 = vunpack.c.l.b16 %v281
    %v321 = vunpack.c.l.b16 %v282
    %v322 = vunpack.c.l.b16 %v283
    %v323 = vpack.c.b16 %v308, %v307
    %v324 = vpack.c.b16 %v310, %v309
    %v325 = vpack.c.b16 %v312, %v311
    %v326 = vpack.c.b16 %v314, %v313
    %v327 = vpack.c.b16 %v316, %v315
    %v328 = vpack.c.b16 %v318, %v317
    %v329 = vpack.c.b16 %v320, %v319
    %v330 = vpack.c.b16 %v322, %v321
    %339 = vmatprep.subr.bf16.mxu0 0
    %340 = vmatpush1.bf16.msra.mxu0 %v323
    %341 = vmatprep.subr.bf16.mxu0 0
    %342 = vmatpush1.bf16.msra.mxu0 %v324
    %343 = vmatprep.subr.bf16.mxu0 0
    %344 = vmatpush1.bf16.msra.mxu0 %v325
    %345 = vmatprep.subr.bf16.mxu0 0
    %346 = vmatpush1.bf16.msra.mxu0 %v326
    %347 = vmatprep.subr.bf16.mxu0 0
    %348 = vmatpush1.bf16.msra.mxu0 %v327
    %349 = vmatprep.subr.bf16.mxu0 0
    %350 = vmatpush1.bf16.msra.mxu0 %v328
    %351 = vmatprep.subr.bf16.mxu0 0
    %352 = vmatpush1.bf16.msra.mxu0 %v329
    %353 = vmatprep.subr.bf16.mxu0 0
    %354 = vmatpush1.bf16.msra.mxu0 %v330
    %355 = vmatprep.subr.bf16.mxu0 0
    %356 = vmatpush1.bf16.msra.mxu0 0
    %357 = vmatprep.subr.bf16.mxu0 0
    %358 = vmatpush1.bf16.msra.mxu0 0
    %359 = vmatprep.subr.bf16.mxu0 0
    %360 = vmatpush1.bf16.msra.mxu0 0
    %361 = vmatprep.subr.bf16.mxu0 0
    %362 = vmatpush1.bf16.msra.mxu0 0
    %363 = vmatprep.subr.bf16.mxu0 0
    %364 = vmatpush1.bf16.msra.mxu0 0
    %365 = vmatprep.subr.bf16.mxu0 0
    %366 = vmatpush1.bf16.msra.mxu0 0
    %367 = vmatprep.subr.bf16.mxu0 0
    %368 = vmatpush1.bf16.msra.mxu0 0
    %369 = vmatprep.subr.bf16.mxu0 0
    %370 = vmatpush1.bf16.msra.mxu0 0
    %371 = vmatprep.mubr.bf16.mxu0 0
    %372 = vmatmul.mubr.bf16.gmra.mrb[0].mxu0 %v267
    %v373 = vpop.f32.mrb[0].mxu0
    %v374 = vadd.f32 %v289, %v373
    %v375 = vpop.f32.mrb[0].mxu0
    %v376 = vpop.f32.mrb[0].mxu0
    %v377 = vpop.f32.mrb[0].mxu0
    %378 = vdwg.mxu0
    %v379 = vmax.f32 %v374, 0.0
    %v380 = vpack.c.bf16 %v379, %v379
    %v381 = vld [vmem:[#allocation8] sm:$0xf]
    %v382 = vld [vmem:[#allocation8 + $0x4] sm:$0xf]
    %v383 = vld [vmem:[#allocation8 + $0x8] sm:$0xf]
    %v384 = vld [vmem:[#allocation8 + $0xc] sm:$0xf]
    %v385 = vld [vmem:[#allocation8 + $0x10] sm:$0xf]
    %v386 = vld [vmem:[#allocation8 + $0x14] sm:$0xf]
    %v387 = vld [vmem:[#allocation8 + $0x18] sm:$0xf]
    %v388 = vld [vmem:[#allocation8 + $0x1c] sm:$0xf]
    %v389 = vld [vmem:[#allocation8 + $0x20] sm:$0xf]
    %v390 = vld [vmem:[#allocation8 + $0x24] sm:$0xf]
    %v391 = vld [vmem:[#allocation8 + $0x28] sm:$0xf]
    %v392 = vld [vmem:[#allocation8 + $0x2c] sm:$0xf]
    %v393 = vld [vmem:[#allocation8 + $0x30] sm:$0xf]
    %v394 = vld [vmem:[#allocation8 + $0x34] sm:$0xf]
    %v395 = vld [vmem:[#allocation8 + $0x38] sm:$0xf]
    %v396 = vld [vmem:[#allocation8 + $0x3c] sm:$0xf]
    %v397 = vld [vmem:[%s7] sm:$0x1]
    %v399 = vlaneseq
    %v400 = vshrl.u32 %v399, 7
    %v401 = vsub.s32 0, %v400
    %v402 = vrot.slane %v397, %v401
    %v420 = vunpack.c.l.b16 %v381
    %v421 = vunpack.c.l.b16 %v382
    %v422 = vunpack.c.l.b16 %v383
    %v423 = vunpack.c.l.b16 %v384
    %v424 = vunpack.c.l.b16 %v385
    %v425 = vunpack.c.l.b16 %v386
    %v426 = vunpack.c.l.b16 %v387
    %v427 = vunpack.c.l.b16 %v388
    %v428 = vunpack.c.l.b16 %v389
    %v429 = vunpack.c.l.b16 %v390
    %v430 = vunpack.c.l.b16 %v391
    %v431 = vunpack.c.l.b16 %v392
    %v432 = vunpack.c.l.b16 %v393
    %v433 = vunpack.c.l.b16 %v394
    %v434 = vunpack.c.l.b16 %v395
    %v435 = vunpack.c.l.b16 %v396
    %v436 = vpack.c.b16 %v421, %v420
    %v437 = vpack.c.b16 %v423, %v422
    %v438 = vpack.c.b16 %v425, %v424
    %v439 = vpack.c.b16 %v427, %v426
    %v440 = vpack.c.b16 %v429, %v428
    %v441 = vpack.c.b16 %v431, %v430
    %v442 = vpack.c.b16 %v433, %v432
    %v443 = vpack.c.b16 %v435, %v434
    %452 = vmatprep.subr.bf16.mxu0 0
    %453 = vmatpush1.bf16.msra.mxu0 %v436
    %454 = vmatprep.subr.bf16.mxu0 0
    %455 = vmatpush1.bf16.msra.mxu0 %v437
    %456 = vmatprep.subr.bf16.mxu0 0
    %457 = vmatpush1.bf16.msra.mxu0 %v438
    %458 = vmatprep.subr.bf16.mxu0 0
    %459 = vmatpush1.bf16.msra.mxu0 %v439
    %460 = vmatprep.subr.bf16.mxu0 0
    %461 = vmatpush1.bf16.msra.mxu0 %v440
    %462 = vmatprep.subr.bf16.mxu0 0
    %463 = vmatpush1.bf16.msra.mxu0 %v441
    %464 = vmatprep.subr.bf16.mxu0 0
    %465 = vmatpush1.bf16.msra.mxu0 %v442
    %466 = vmatprep.subr.bf16.mxu0 0
    %467 = vmatpush1.bf16.msra.mxu0 %v443
    %468 = vmatprep.subr.bf16.mxu0 0
    %469 = vmatpush1.bf16.msra.mxu0 0
    %470 = vmatprep.subr.bf16.mxu0 0
    %471 = vmatpush1.bf16.msra.mxu0 0
    %472 = vmatprep.subr.bf16.mxu0 0
    %473 = vmatpush1.bf16.msra.mxu0 0
    %474 = vmatprep.subr.bf16.mxu0 0
    %475 = vmatpush1.bf16.msra.mxu0 0
    %476 = vmatprep.subr.bf16.mxu0 0
    %477 = vmatpush1.bf16.msra.mxu0 0
    %478 = vmatprep.subr.bf16.mxu0 0
    %479 = vmatpush1.bf16.msra.mxu0 0
    %480 = vmatprep.subr.bf16.mxu0 0
    %481 = vmatpush1.bf16.msra.mxu0 0
    %482 = vmatprep.subr.bf16.mxu0 0
    %483 = vmatpush1.bf16.msra.mxu0 0
    %484 = vmatprep.mubr.bf16.mxu0 0
    %485 = vmatmul.mubr.bf16.gmra.mrb[0].mxu0 %v380
    %v486 = vpop.f32.mrb[0].mxu0
    %v487 = vadd.f32 %v402, %v486
    %v488 = vpop.f32.mrb[0].mxu0
    %v489 = vpop.f32.mrb[0].mxu0
    %v490 = vpop.f32.mrb[0].mxu0
    %491 = vdwg.mxu0
    %v492 = vld [vmem:[%s1] sm:$0xff]
    %v493 = vld [vmem:[%s8] sm:$0x1]
    %495 = vset.pattern.permute.xlu0 0
    %496 = vperm.xlu0 %495, %v492
    %v497 = vpop.permute.xlu0 %496
    %v500 = vlaneseq
    %v501 = vshrl.u32 %v500, 7
    %v502 = vsub.s32 0, %v501
    %v503 = vrot.slane %v493, %v502
    %v505 = vmul.f32 %v497, %v503
    %v506 = vadd.f32 %v487, %v505
    %v507 = vxor.u32 %v506, 2147483648
    %v508 = vmul.f32 %v507, 1.442695
    %v509 = vpow.pop %v508
    %v510 = vadd.f32 %v509, 1.0
    %v511 = vrcp.pop %v510
    %v512 = vmul.f32 1.0, %v511
    %v513 = vpack.c.bf16 %v512, %v512
    %514 = vst [vmem:[#allocation10] sm:$0xf] %v513
    // Predicated region
    $region54: #{tpu_custom_call.1} parent=1 // pred_check
      _
    $region55: #{tpu_custom_call.1} parent=1 // pred_check_branch
      %516 = sbr.rel (0) target = $region57
    $region56: #{tpu_custom_call.1} parent=1 // pred_region
      %s518 = ssub.s32 64, 64
      %519 = vsyncadd [#allocation4], %s518
      %s521 = sshll.u32 [#allocation10], 4
      %s522 = int_to_ptr.vmem [resolvable:$true] %s521
      %524 = dma.vmem_to_hbm [thread:$0]  %s522, 64, %s9, [#allocation4]
    $region57: #{tpu_custom_call.1} parent=1 // pred_fallthru
      _
    // Predicated region
    $region58: #{tpu_custom_call.1} parent=1 // pred_check
      _
    $region59: #{tpu_custom_call.1} parent=1 // pred_check_branch
      %526 = sbr.rel (0) target = $region61
    $region60: #{tpu_custom_call.1} parent=1 // pred_region
      %527 = dma.done [#allocation4], 64
    $region61: #{tpu_custom_call.1} parent=1 // pred_fallthru
      _
    %528 = vsyncpa [#allocation3], 1
    %529 = vsyncpa [#allocation6], 1
    %530 = vsyncpa [#allocation9], 1
    %531 = vsyncpa [#allocation4], 1

</llo_original>
